<compile_context>
chip_gen: v5e
topology: v5e:2x2
jax: 0.10.0
libtpu: 0.0.40
codegen_flags: <defaults>
</compile_context>

<pallas_src>
import numpy as np
import jax
import jax.numpy as jnp
from jax.experimental import pallas as pl
from jax.experimental.pallas import tpu as pltpu

EPS = 1e-5
SLOPE = 0.01      # InPlaceABNSync leaky_relu slope
LANE = 128
SUBLANE = 8


def _leaky_relu(x):
    return jnp.where(x > 0, x, SLOPE * x)


def _round_up(x, m):
    return (x + m - 1) // m * m


# ---------------------------------------------------------------------------
# Pallas kernels (closures over static shape constants)
# ---------------------------------------------------------------------------
def _run_fused_stages(x_p, M_all, U_all, w1cat, shift_cat, mask, Cin, Ccat_p):
    """All pyramid stages fused:  pool -> 1x1 conv (BN scale folded) ->
    shift + leaky_relu -> block-diagonal mask -> bilinear upsample, written
    directly into the concat layout [priors(4*Cout) | x(Cin) | zero pad]."""
    N, HW, Cin_p = x_p.shape
    S2P = M_all.shape[0]
    C4 = w1cat.shape[1]
    pad = Ccat_p - C4 - Cin
    assert pad >= 0

    def kernel(x_ref, m_ref, u_ref, w1_ref, shift_ref, mask_ref, o_ref):
        x = x_ref[0]                                            # (HW, Cin_p) bf16
        pooled = jnp.dot(m_ref[...], x,
                         preferred_element_type=jnp.float32)    # (S2P, Cin_p)
        y = jnp.dot(pooled.astype(jnp.bfloat16), w1_ref[...],
                    preferred_element_type=jnp.float32)         # (S2P, 4*Cout)
        y = _leaky_relu(y + shift_ref[...])                     # BN shift + act
        # Zero (a) cross-stage blocks of the shared 1x1-conv matmul and
        # (b) sublane-padded pooled rows, which become leaky_relu(shift) != 0
        # after the BN affine.  U_all's columns for the padded rows are ALSO
        # zero, so they can never reach the upsample (belt & suspenders).
        y = y * mask_ref[...]
        pri = jnp.dot(u_ref[...], y.astype(jnp.bfloat16),
                      preferred_element_type=jnp.float32)       # (HW, 4*Cout)
        o_ref[0, :, :C4] = pri.astype(jnp.bfloat16)
        o_ref[0, :, C4:C4 + Cin] = x[:, :Cin]                   # x passthrough
        if pad:
            o_ref[0, :, C4 + Cin:] = jnp.zeros((HW, pad), jnp.bfloat16)

    flops = 2 * N * (S2P * HW * Cin_p + S2P * Cin_p * C4 + HW * S2P * C4)
    bytes_accessed = (2 * (x_p.size + N * HW * Ccat_p
                           + M_all.size + U_all.size + w1cat.size)
                      + 4 * (shift_cat.size + mask.size))

    return pl.pallas_call(
        kernel,
        out_shape=jax.ShapeDtypeStruct((N, HW, Ccat_p), jnp.bfloat16),
        grid=(N,),
        in_specs=[
            pl.BlockSpec((1, HW, Cin_p), lambda n: (n, 0, 0)),
            pl.BlockSpec((S2P, HW), lambda n: (0, 0)),
            pl.BlockSpec((HW, S2P), lambda n: (0, 0)),
            pl.BlockSpec((Cin_p, C4), lambda n: (0, 0)),
            pl.BlockSpec((1, C4), lambda n: (0, 0)),
            pl.BlockSpec((S2P, C4), lambda n: (0, 0)),
        ],
        out_specs=pl.BlockSpec((1, HW, Ccat_p), lambda n: (n, 0, 0)),
        compiler_params=pltpu.CompilerParams(
            dimension_semantics=("parallel",),
            vmem_limit_bytes=64 * 1024 * 1024),
        cost_estimate=pl.CostEstimate(flops=int(flops), transcendentals=0,
                                      bytes_accessed=int(bytes_accessed)),
    )(x_p, M_all, U_all, w1cat, shift_cat, mask)


def _run_bottleneck(cat_pad, w3p, shift3, H, W, TKC):
    """3x3 conv (padding=1) + folded BN shift + leaky_relu.  The 9 taps are
    accumulated in-kernel from a 1-pixel-halo block (no im2col); the reduction
    is tiled over the concatenated-channel axis with an f32 VMEM accumulator."""
    N, Hp2, Wp2, Ccat_p = cat_pad.shape
    Cout_p = w3p.shape[-1]
    HW = H * W
    assert Ccat_p % TKC == 0
    KT = Ccat_p // TKC

    def kernel(cat_ref, w_ref, shift_ref, o_ref, acc_ref):
        kc = pl.program_id(1)

        @pl.when(kc == 0)
        def _init():
            acc_ref[...] = jnp.zeros_like(acc_ref)

        xpad = cat_ref[0]                                   # (H+2, W+2, TKC) bf16
        acc = acc_ref[...]
        for ky in range(3):                                 # unrolled 9-tap accum
            for kx in range(3):
                win = xpad[ky:ky + H, kx:kx + W, :].reshape(HW, TKC)
                acc = acc + jnp.dot(win, w_ref[ky, kx, :, :],
                                    preferred_element_type=jnp.float32)
        acc_ref[...] = acc

        @pl.when(kc == pl.num_programs(1) - 1)
        def _finalize():
            o_ref[0] = _leaky_relu(acc + shift_ref[...]).astype(o_ref.dtype)

    flops = 2 * N * 9 * HW * Ccat_p * Cout_p
    bytes_accessed = (2 * (cat_pad.size + N * w3p.size + N * HW * Cout_p)
                      + 4 * shift3.size)

    return pl.pallas_call(
        kernel,
        out_shape=jax.ShapeDtypeStruct((N, HW, Cout_p), jnp.bfloat16),
        grid=(N, KT),
        in_specs=[
            pl.BlockSpec((1, Hp2, Wp2, TKC), lambda n, kc: (n, 0, 0, kc)),
            pl.BlockSpec((3, 3, TKC, Cout_p), lambda n, kc: (0, 0, kc, 0)),
            pl.BlockSpec((1, Cout_p), lambda n, kc: (0, 0)),
        ],
        out_specs=pl.BlockSpec((1, HW, Cout_p), lambda n, kc: (n, 0, 0)),
        scratch_shapes=[pltpu.VMEM((HW, Cout_p), jnp.float32)],
        compiler_params=pltpu.CompilerParams(
            dimension_semantics=("parallel", "arbitrary"),
            vmem_limit_bytes=64 * 1024 * 1024),
        cost_estimate=pl.CostEstimate(flops=int(flops), transcendentals=0,
                                      bytes_accessed=int(bytes_accessed)),
    )(cat_pad, w3p, shift3)


# ---------------------------------------------------------------------------
# Operator construction, BN folding, parameter init
# ---------------------------------------------------------------------------
def _adaptive_pool_matrix(out_size, in_size):
    """Row-averaging matrix matching torch.nn.AdaptiveAvgPool2d bin rule."""
    P = np.zeros((out_size, in_size), np.float32)
    for i in range(out_size):
        start = (i * in_size) // out_size
        end = -((-(i + 1) * in_size) // out_size)    # ceil((i+1)*in/out)
        P[i, start:end] = 1.0 / (end - start)
    return P


def _bilinear_matrix(out_size, in_size):
    """1-D weights of F.interpolate(mode='bilinear', align_corners=True)."""
    U = np.zeros((out_size, in_size), np.float32)
    if in_size == 1:
        U[:, 0] = 1.0
        return U
    scale = (in_size - 1) / (out_size - 1) if out_size > 1 else 0.0
    for o in range(out_size):
        src = o * scale
        i0 = min(int(np.floor(src)), in_size - 2)
        frac = src - i0
        U[o, i0] += 1.0 - frac
        U[o, i0 + 1] += frac
    return U


def _bn_affine(weight, bias, mean, var):
    scale = weight / np.sqrt(var + EPS)
    shift = bias - mean * scale
    return scale.astype(np.float32), shift.astype(np.float32)


def _build_stage_operands(params, H, W, Cin, Cout, Cin_p):
    """Stack the four stages into one pooling matrix, one (BN-folded) 1x1-conv
    weight, one block-diagonal mask and one upsample matrix."""
    sizes = [st["size"] for st in params["stages"]]
    HW = H * W
    s2 = [s * s for s in sizes]
    offs = np.concatenate([[0], np.cumsum(s2)]).astype(np.int64)
    S2 = int(offs[-1])
    S2P = _round_up(max(S2, SUBLANE), SUBLANE)
    C4 = len(sizes) * Cout

    M_all = np.zeros((S2P, HW), np.float32)
    U_all = np.zeros((HW, S2P), np.float32)
    w1cat = np.zeros((Cin_p, C4), np.float32)
    shift_cat = np.zeros((1, C4), np.float32)
    mask = np.zeros((S2P, C4), np.float32)

    for k, st in enumerate(params["stages"]):
        s = st["size"]
        o = int(offs[k])
        Ph, Pw = _adaptive_pool_matrix(s, H), _adaptive_pool_matrix(s, W)
        Uh, Uw = _bilinear_matrix(H, s), _bilinear_matrix(W, s)
        M_all[o:o + s * s, :] = np.kron(Ph, Pw)      # pooled_flat = M @ x_flat
        U_all[:, o:o + s * s] = np.kron(Uh, Uw)      # up_flat = U @ pooled_flat
        scale, shift = _bn_affine(*[np.asarray(a) for a in st["bn"]])
        w1 = np.asarray(st["w1"])                    # (Cin, Cout)
        w1cat[:Cin, k * Cout:(k + 1) * Cout] = w1 * scale[None, :]
        shift_cat[0, k * Cout:(k + 1) * Cout] = shift
        mask[o:o + s * s, k * Cout:(k + 1) * Cout] = 1.0

    # Safety (see kernel comment): the sublane-padded pooled rows (>= S2) turn
    # into leaky_relu(shift) != 0 after the BN affine and must never reach the
    # upsample matmul.  Both the mask rows and the U_all columns are zero.
    assert not mask[S2:, :].any()
    assert not U_all[:, S2:].any()

    return (jnp.asarray(M_all, jnp.bfloat16),
            jnp.asarray(U_all, jnp.bfloat16),
            jnp.asarray(w1cat, jnp.bfloat16),
            jnp.asarray(shift_cat, jnp.float32),
            jnp.asarray(mask, jnp.float32))


def _build_bottleneck_operands(params, Cout, Ccat, Ccat_p, Cout_p):
    w3 = np.asarray(params["w3"])                    # (3, 3, Ccat, Cout)
    scale3, shift3 = _bn_affine(*[np.asarray(a) for a in params["bn3"]])
    w3p = np.zeros((3, 3, Ccat_p, Cout_p), np.float32)
    w3p[:, :, :Ccat, :Cout] = w3 * scale3[None, None, None, :]
    shift3p = np.zeros((1, Cout_p), np.float32)
    shift3p[0, :Cout] = shift3
    return jnp.asarray(w3p, jnp.bfloat16), jnp.asarray(shift3p, jnp.float32)


def init_params(key, features, out_features, sizes):
    params = {"stages": []}
    for s in sizes:
        key, k1, k2, k3, k4, k5 = jax.random.split(key, 6)
        w1 = jax.random.normal(k1, (features, out_features), jnp.float32) / np.sqrt(features)
        bn_w = 1.0 + 0.1 * jax.random.normal(k2, (out_features,), jnp.float32)
        bn_b = 0.1 * jax.random.normal(k3, (out_features,), jnp.float32)
        bn_m = 0.1 * jax.random.normal(k4, (out_features,), jnp.float32)
        bn_v = 1.0 + 0.1 * jax.random.uniform(k5, (out_features,), jnp.float32)
        params["stages"].append(dict(size=s, w1=w1, bn=(bn_w, bn_b, bn_m, bn_v)))
    cin = features + len(sizes) * out_features
    key, k1, k2, k3, k4, k5 = jax.random.split(key, 6)
    params["w3"] = jax.random.normal(k1, (3, 3, cin, out_features), jnp.float32) / np.sqrt(9 * cin)
    params["bn3"] = (1.0 + 0.1 * jax.random.normal(k2, (out_features,), jnp.float32),
                     0.1 * jax.random.normal(k3, (out_features,), jnp.float32),
                     0.1 * jax.random.normal(k4, (out_features,), jnp.float32),
                     1.0 + 0.1 * jax.random.uniform(k5, (out_features,), jnp.float32))
    return params


# ---------------------------------------------------------------------------
# Forward pass (wrapper around the two Pallas kernels)
# ---------------------------------------------------------------------------
def psp_forward(x_nchw, params, out_features):
    N, C, H, W = x_nchw.shape
    HW = H * W
    Cout = out_features
    C4 = len(params["stages"]) * Cout
    Ccat = C4 + C                             # torch.cat(priors + [feats], 1)
    Cin_p = _round_up(C, LANE)
    Ccat_p = _round_up(Ccat, LANE)
    Cout_p = _round_up(Cout, LANE)

    # NCHW -> (N, HW, Cin_p) bf16, channels zero-padded to a lane multiple.
    x_flat = jnp.transpose(x_nchw, (0, 2, 3, 1)).reshape(N, HW, C)
    x_p = jnp.pad(x_flat, ((0, 0), (0, 0), (0, Cin_p - C))).astype(jnp.bfloat16)

    M_all, U_all, w1cat, shift_cat, mask = _build_stage_operands(
        params, H, W, C, Cout, Cin_p)

    # Fused pyramid stages; the kernel emits the concatenated feature map
    # [priors | x | zero pad] directly (no jnp.concatenate, x read once).
    cat = _run_fused_stages(x_p, M_all, U_all, w1cat, shift_cat, mask, C, Ccat_p)

    # Single 1-pixel halo pad for the 3x3 conv (replaces the old 9x im2col).
    # NOTE: this one remaining copy could be folded into the stage kernel's
    # output block; very large H*W would also want HW-row tiling with halo
    # BlockSpecs / manual DMA in the bottleneck.
    cat_pad = jnp.pad(cat.reshape(N, H, W, Ccat_p),
                      ((0, 0), (1, 1), (1, 1), (0, 0)))

    w3p, shift3p = _build_bottleneck_operands(params, Cout, Ccat, Ccat_p, Cout_p)

    # Channel-tile size for the bottleneck reduction (one tile at test shapes;
    # 512-wide tiles at production shapes keep blocks inside VMEM budgets).
    TKC = next(t for t in (512, 256, 128) if Ccat_p % t == 0)
    out_p = _run_bottleneck(cat_pad, w3p, shift3p, H, W, TKC)

    out = out_p[:, :, :Cout].astype(jnp.float32)
    return jnp.transpose(out.reshape(N, H, W, Cout), (0, 3, 1, 2))


# ---------------------------------------------------------------------------
# Pure-JAX f32 reference (same math, no Pallas) for a correctness check
# ---------------------------------------------------------------------------
def psp_reference(x_nchw, params, out_features):
    N, C, H, W = x_nchw.shape
    hp = jax.lax.Precision.HIGHEST
    x_nhwc = jnp.transpose(x_nchw, (0, 2, 3, 1)).astype(jnp.float32)
    priors = []
    for st in params["stages"]:
        s = st["size"]
        Ph, Pw = _adaptive_pool_matrix(s, H), _adaptive_pool_matrix(s, W)
        Uh, Uw = _bilinear_matrix(H, s), _bilinear_matrix(W, s)
        pooled = jnp.einsum('iy,jx,nyxc->nijc', Ph, Pw, x_nhwc, precision=hp)
        y = jnp.einsum('nijc,cd->nijd', pooled, st["w1"], precision=hp)
        w_, b_, m_, v_ = st["bn"]
        scale = w_ / jnp.sqrt(v_ + EPS)
        y = y * scale + (b_ - m_ * scale)
        y = jnp.where(y > 0, y, SLOPE * y)
        priors.append(jnp.einsum('yi,xj,nijd->nyxd', Uh, Uw, y, precision=hp))
    cat = jnp.concatenate(priors + [x_nhwc], axis=-1)
    xpad = jnp.pad(cat, ((0, 0), (1, 1), (1, 1), (0, 0)))
    out = jnp.zeros((N, H, W, out_features), jnp.float32)
    for ky in range(3):
        for kx in range(3):
            out = out + jnp.einsum('nyxc,cd->nyxd',
                                   xpad[:, ky:ky + H, kx:kx + W, :],
                                   params["w3"][ky, kx], precision=hp)
    w_, b_, m_, v_ = params["bn3"]
    scale = w_ / jnp.sqrt(v_ + EPS)
    out = out * scale + (b_ - m_ * scale)
    out = jnp.where(out > 0, out, SLOPE * out)
    return jnp.transpose(out, (0, 3, 1, 2))


if __name__ == "__main__":
    N, features, H, W = 2, 8, 16, 16
    out_features = 16
    sizes = (1, 2, 3, 6)

    key = jax.random.PRNGKey(0)
    kx_, kp = jax.random.split(key)
    x = jax.random.normal(kx_, (N, features, H, W), jnp.float32)
    params = init_params(kp, features, out_features, sizes)

    out = psp_forward(x, params, out_features)
    out = jax.block_until_ready(out)
    assert out.shape == (N, out_features, H, W), out.shape

    ref = psp_reference(x, params, out_features)
    # bf16 matmul operands + bf16 storage of the concatenated features give
    # ~1% end-to-end error against the f32 HIGHEST-precision reference.
    np.testing.assert_allclose(np.asarray(out), np.asarray(ref),
                               rtol=2e-2, atol=4e-2)
    print("KERNEL_OK")
</pallas_src>

<mosaic_0001>
module attributes {stable_mosaic.version = 11 : i64} {
  func.func @kernel(%arg0: i32, %arg1: memref<1x256x128xbf16, #tpu.memory_space<vmem>>, %arg2: memref<56x256xbf16, #tpu.memory_space<vmem>>, %arg3: memref<256x56xbf16, #tpu.memory_space<vmem>>, %arg4: memref<128x64xbf16, #tpu.memory_space<vmem>>, %arg5: memref<1x64xf32, #tpu.memory_space<vmem>>, %arg6: memref<56x64xf32, #tpu.memory_space<vmem>>, %arg7: memref<1x256x128xbf16, #tpu.memory_space<vmem>>) attributes {dimension_semantics = [#tpu.dimension_semantics<parallel>], iteration_bounds = array<i64: 2>, scalar_prefetch = 0 : i64, scratch_operands = 0 : i64, tpu.core_type = #tpu.core_type<tc>, window_params = [{transform_indices = @transform_0, window_bounds = array<i64: 1, 256, 128>}, {pipeline_mode = #tpu.pipeline_mode<synchronous>, transform_indices = @transform_1, window_bounds = array<i64: 56, 256>}, {pipeline_mode = #tpu.pipeline_mode<synchronous>, transform_indices = @transform_2, window_bounds = array<i64: 256, 56>}, {pipeline_mode = #tpu.pipeline_mode<synchronous>, transform_indices = @transform_3, window_bounds = array<i64: 128, 64>}, {pipeline_mode = #tpu.pipeline_mode<synchronous>, transform_indices = @transform_4, window_bounds = array<i64: 1, 64>}, {pipeline_mode = #tpu.pipeline_mode<synchronous>, transform_indices = @transform_5, window_bounds = array<i64: 56, 64>}, {transform_indices = @transform_6, window_bounds = array<i64: 1, 256, 128>}]} {
    %c0 = arith.constant 0 : index
    %c0_0 = arith.constant 0 : index
    %c0_1 = arith.constant 0 : index
    %0 = vector.load %arg1[%c0, %c0_0, %c0_1] : memref<1x256x128xbf16, #tpu.memory_space<vmem>>, vector<1x256x128xbf16>
    %1 = vector.shape_cast %0 : vector<1x256x128xbf16> to vector<256x128xbf16>
    %c0_2 = arith.constant 0 : index
    %c0_3 = arith.constant 0 : index
    %2 = vector.load %arg2[%c0_2, %c0_3] : memref<56x256xbf16, #tpu.memory_space<vmem>>, vector<56x256xbf16>
    %cst = arith.constant dense<0.000000e+00> : vector<56x128xf32>
    %3 = tpu.matmul %2, %1, %cst {dimension_numbers = #tpu.dot_dimension_numbers<[1], [0], [0], [1], [0, 0, 1, 1], [], []>} : vector<56x256xbf16>, vector<256x128xbf16>, vector<56x128xf32> -> vector<56x128xf32>
    %4 = arith.truncf %3 : vector<56x128xf32> to vector<56x128xbf16>
    %c0_4 = arith.constant 0 : index
    %c0_5 = arith.constant 0 : index
    %5 = vector.load %arg4[%c0_4, %c0_5] : memref<128x64xbf16, #tpu.memory_space<vmem>>, vector<128x64xbf16>
    %cst_6 = arith.constant dense<0.000000e+00> : vector<56x64xf32>
    %6 = tpu.matmul %4, %5, %cst_6 {dimension_numbers = #tpu.dot_dimension_numbers<[1], [0], [0], [1], [0, 0, 1, 1], [], []>} : vector<56x128xbf16>, vector<128x64xbf16>, vector<56x64xf32> -> vector<56x64xf32>
    %c0_7 = arith.constant 0 : index
    %c0_8 = arith.constant 0 : index
    %7 = vector.load %arg5[%c0_7, %c0_8] : memref<1x64xf32, #tpu.memory_space<vmem>>, vector<1x64xf32>
    %8 = vector.broadcast %7 : vector<1x64xf32> to vector<56x64xf32>
    %9 = arith.addf %6, %8 : vector<56x64xf32>
    %cst_9 = arith.constant 0.000000e+00 : f32
    %10 = vector.broadcast %cst_9 : f32 to vector<56x64xf32>
    %11 = arith.cmpf ogt, %9, %10 : vector<56x64xf32>
    %cst_10 = arith.constant 0.00999999977 : f32
    %12 = vector.broadcast %cst_10 : f32 to vector<56x64xf32>
    %13 = arith.mulf %12, %9 : vector<56x64xf32>
    %14 = arith.select %11, %9, %13 : vector<56x64xi1>, vector<56x64xf32>
    %c0_11 = arith.constant 0 : index
    %c0_12 = arith.constant 0 : index
    %15 = vector.load %arg6[%c0_11, %c0_12] : memref<56x64xf32, #tpu.memory_space<vmem>>, vector<56x64xf32>
    %16 = arith.mulf %14, %15 : vector<56x64xf32>
    %c0_13 = arith.constant 0 : index
    %c0_14 = arith.constant 0 : index
    %17 = vector.load %arg3[%c0_13, %c0_14] : memref<256x56xbf16, #tpu.memory_space<vmem>>, vector<256x56xbf16>
    %18 = arith.truncf %16 : vector<56x64xf32> to vector<56x64xbf16>
    %cst_15 = arith.constant dense<0.000000e+00> : vector<256x64xf32>
    %19 = tpu.matmul %17, %18, %cst_15 {dimension_numbers = #tpu.dot_dimension_numbers<[1], [0], [0], [1], [0, 0, 1, 1], [], []>} : vector<256x56xbf16>, vector<56x64xbf16>, vector<256x64xf32> -> vector<256x64xf32>
    %20 = arith.truncf %19 : vector<256x64xf32> to vector<256x64xbf16>
    %c0_16 = arith.constant 0 : index
    %c0_17 = arith.constant 0 : index
    %c0_18 = arith.constant 0 : index
    %21 = vector.load %arg7[%c0_16, %c0_17, %c0_18] : memref<1x256x128xbf16, #tpu.memory_space<vmem>>, vector<1x256x64xbf16>
    %22 = vector.shape_cast %21 : vector<1x256x64xbf16> to vector<256x64xbf16>
    %23 = vector.shape_cast %20 : vector<256x64xbf16> to vector<1x256x64xbf16>
    tpu.vector_store %arg7[%c0_16, %c0_17, %c0_18], %23 {strides = array<i32>} : memref<1x256x128xbf16, #tpu.memory_space<vmem>>, vector<1x256x64xbf16>,
    %24 = vector.extract_strided_slice %1 {offsets = [0, 0], sizes = [256, 8], strides = [1, 1]} : vector<256x128xbf16> to vector<256x8xbf16>
    %c0_19 = arith.constant 0 : index
    %c0_20 = arith.constant 0 : index
    %c64 = arith.constant 64 : index
    %25 = vector.load %arg7[%c0_19, %c0_20, %c64] : memref<1x256x128xbf16, #tpu.memory_space<vmem>>, vector<1x256x8xbf16>
    %26 = vector.shape_cast %25 : vector<1x256x8xbf16> to vector<256x8xbf16>
    %27 = vector.shape_cast %24 : vector<256x8xbf16> to vector<1x256x8xbf16>
    tpu.vector_store %arg7[%c0_19, %c0_20, %c64], %27 {strides = array<i32>} : memref<1x256x128xbf16, #tpu.memory_space<vmem>>, vector<1x256x8xbf16>,
    %cst_21 = arith.constant 0.000000e+00 : bf16
    %28 = vector.broadcast %cst_21 : bf16 to vector<256x56xbf16>
    %c0_22 = arith.constant 0 : index
    %c0_23 = arith.constant 0 : index
    %c72 = arith.constant 72 : index
    %29 = vector.load %arg7[%c0_22, %c0_23, %c72] : memref<1x256x128xbf16, #tpu.memory_space<vmem>>, vector<1x256x56xbf16>
    %30 = vector.shape_cast %29 : vector<1x256x56xbf16> to vector<256x56xbf16>
    %31 = vector.shape_cast %28 : vector<256x56xbf16> to vector<1x256x56xbf16>
    tpu.vector_store %arg7[%c0_22, %c0_23, %c72], %31 {strides = array<i32>} : memref<1x256x128xbf16, #tpu.memory_space<vmem>>, vector<1x256x56xbf16>,
    return
  }
  func.func @transform_0(%arg0: i32) -> (i32, i32, i32) {
    %c0_i32 = arith.constant 0 : i32
    %c0_i32_0 = arith.constant 0 : i32
    %c0_i32_1 = arith.constant 0 : i32
    return %arg0, %c0_i32, %c0_i32_0 : i32, i32, i32
  }
  func.func @transform_1(%arg0: i32) -> (i32, i32) {
    %c0_i32 = arith.constant 0 : i32
    %c0_i32_0 = arith.constant 0 : i32
    %c0_i32_1 = arith.constant 0 : i32
    return %c0_i32, %c0_i32_0 : i32, i32
  }
  func.func @transform_2(%arg0: i32) -> (i32, i32) {
    %c0_i32 = arith.constant 0 : i32
    %c0_i32_0 = arith.constant 0 : i32
    %c0_i32_1 = arith.constant 0 : i32
    return %c0_i32, %c0_i32_0 : i32, i32
  }
  func.func @transform_3(%arg0: i32) -> (i32, i32) {
    %c0_i32 = arith.constant 0 : i32
    %c0_i32_0 = arith.constant 0 : i32
    %c0_i32_1 = arith.constant 0 : i32
    return %c0_i32, %c0_i32_0 : i32, i32
  }
  func.func @transform_4(%arg0: i32) -> (i32, i32) {
    %c0_i32 = arith.constant 0 : i32
    %c0_i32_0 = arith.constant 0 : i32
    %c0_i32_1 = arith.constant 0 : i32
    return %c0_i32, %c0_i32_0 : i32, i32
  }
  func.func @transform_5(%arg0: i32) -> (i32, i32) {
    %c0_i32 = arith.constant 0 : i32
    %c0_i32_0 = arith.constant 0 : i32
    %c0_i32_1 = arith.constant 0 : i32
    return %c0_i32, %c0_i32_0 : i32, i32
  }
  func.func @transform_6(%arg0: i32) -> (i32, i32, i32) {
    %c0_i32 = arith.constant 0 : i32
    %c0_i32_0 = arith.constant 0 : i32
    %c0_i32_1 = arith.constant 0 : i32
    return %arg0, %c0_i32, %c0_i32_0 : i32, i32, i32
  }
}

</mosaic_0001>

<llo_original>
// kernel: tpu_custom_call.1
$region0: #{tpu_custom_call.1}
  #allocation0 [shape = 'u32[]', space=smem, size = 0x4, offset = 0x4, fixed_abs, tag = 'smem constant byte address 0x4 - core index']
  #allocation1 [shape = 'u32[72,128]{1,0:T(1,128)}', space=vmem, size = 0x9000, scoped, tag = 'internal scratch']
  %s0 = inlined_call_operand.vmem [shape: bf16[2,256,128], index: 0, kind: input, shape index: {}]
  %s1 = inlined_call_operand.hbm [shape: bf16[56,256], index: 1, kind: input, shape index: {}]
  %s2 = inlined_call_operand.vmem [shape: bf16[256,56], index: 2, kind: input, shape index: {}]
  %s3 = inlined_call_operand.vmem [shape: bf16[128,64], index: 3, kind: input, shape index: {}]
  %s4 = inlined_call_operand.vmem [shape: f32[1,64], index: 4, kind: input, shape index: {}]
  %s5 = inlined_call_operand.hbm [shape: f32[56,64], index: 5, kind: input, shape index: {}]
  %s6 = inlined_call_operand.hbm [shape: bf16[2,256,128], index: 6, kind: output, shape index: {}]
  %s7 = sld [smem:[#allocation0]]
  $region65: #{tpu_custom_call.1} parent=0
    _
  %s9 = ssub.s32 1, %s7
  %s10 = scalar_select 0, %s9, %s7
  $region1: #{tpu_custom_call.1} parent=0
    #allocation2 [shape = 'u8[28672]{0}', space=vmem, size = 0x7000, scoped, tag = 'input window, operand 1, single buffered']
    #allocation3 [shape = 's32[2]{0}', space=sflag, size = 0x8, scoped, tag = 'scoped memory for tpu_custom_call.1']
    #allocation4 [shape = 's32[2]{0}', space=sflag, size = 0x8, scoped, tag = 'scoped memory for tpu_custom_call.1']
    #allocation5 [shape = 'u8[28672]{0}', space=vmem, size = 0x7000, scoped, tag = 'input window, operand 5, single buffered']
    #allocation6 [shape = 's32[1]{0}', space=sflag, size = 0x4, scoped, tag = 'scoped memory for tpu_custom_call.1']
    #allocation7 [shape = 'u8[131072]{0}', space=vmem, size = 0x20000, scoped, tag = 'output window, operand 0']
    %11 = vsyncpa [#allocation3], 0
    %12 = vsyncpa [#allocation6], 0
    %13 = vsyncpa [#allocation4], 0
    %s14 = scalar_lea.sflag [#allocation4], 1
    %15 = vsyncpa %s14, 0
    loop: start=0, step=1, limit=4
    $region2: #{tpu_custom_call.1} parent=1 // loop_pre_header
      _
    $region3: #{tpu_custom_call.1} parent=1 // loop_header
      %s17 = sphi 0, %s21
      %p18 = scmp.ge.s32.totalorder %s17, 4
      %s27 = sphi 0, %s29
      %s30 = sphi 0, %s27
      %s31 = sphi 0, %s30
      %s47 = sphi 0, %s31
      %s51 = sphi 0, %s51
      %s53 = sphi 0, %s51
      %s54 = sphi 0, %s53
      %s68 = sphi 0, %s54
      %s72 = sphi 0, %s72
      %s74 = sphi 0, %s72
      %s75 = sphi 0, %s74
      %s89 = sphi 0, %s75
      %s93 = sphi 0, %s93
      %s95 = sphi 0, %s93
      %s96 = sphi 0, %s95
      %s110 = sphi 0, %s96
      %s114 = sphi 0, %s114
      %s116 = sphi 0, %s114
      %s117 = sphi 0, %s116
      %s131 = sphi 0, %s117
      %s135 = sphi 0, %s135
      %s137 = sphi 0, %s135
      %s138 = sphi 0, %s137
      %s152 = sphi 0, %s138
      %s158 = sphi 0, %s160
      %s161 = sphi 0, %s158
      %s162 = sphi 0, %s161
      %s178 = sphi 0, %s162
    $region4: #{tpu_custom_call.1} parent=1 // loop_header_branch
      %20 = sbr.rel (%p18) target = $region8
    $region5: #{tpu_custom_call.1} parent=1 // loop_body
      %s22 = ssub.s32 %s17, 1
      %s23 = ssub.s32 %s17, 2
      %s24 = sadd.s32 %s17, 1
      %s25 = ssub.s32 %s17, %s24
      %p26 = scmp.eq.s32.totalorder %s25, 0
      %s28 = sadd.s32 %s27, 1
      %s29 = scalar_select %p26, %s27, %s28
      %p32 = pneg %p26
      %p33 = scmp.eq.s32.totalorder %s17, 1
      %p34 = por %p32, %p33
      %p35 = scmp.ne.s32.totalorder %s27, %s30
      %p36 = scmp.eq.s32.totalorder %s17, 0
      %p37 = por %p35, %p36
      %p38 = scmp.ne.s32.totalorder %s27, %s30
      %p39 = scmp.eq.s32.totalorder %s22, 1
      %p40 = por %p38, %p39
      %p41 = scmp.ne.s32.totalorder %s30, %s31
      %p42 = scmp.eq.s32.totalorder %s22, 0
      %p43 = por %p41, %p42
      %p44 = scmp.ne.s32.totalorder %s30, %s31
      %p45 = scmp.eq.s32.totalorder %s23, 1
      %p46 = por %p44, %p45
      %p48 = scmp.ne.s32.totalorder %s31, %s47
      %p49 = scmp.eq.s32.totalorder %s23, 0
      %p50 = por %p48, %p49
      %s52 = sadd.s32 %s51, 1
      %p55 = scmp.eq.s32.totalorder %s17, 1
      %p56 = scmp.ne.s32.totalorder %s51, %s53
      %p57 = scmp.eq.s32.totalorder %s17, 0
      %p58 = por %p56, %p57
      %p59 = scmp.ne.s32.totalorder %s51, %s53
      %p60 = scmp.eq.s32.totalorder %s22, 1
      %p61 = por %p59, %p60
      %p62 = scmp.ne.s32.totalorder %s53, %s54
      %p63 = scmp.eq.s32.totalorder %s22, 0
      %p64 = por %p62, %p63
      %p65 = scmp.ne.s32.totalorder %s53, %s54
      %p66 = scmp.eq.s32.totalorder %s23, 1
      %p67 = por %p65, %p66
      %p69 = scmp.ne.s32.totalorder %s54, %s68
      %p70 = scmp.eq.s32.totalorder %s23, 0
      %p71 = por %p69, %p70
      %s73 = sadd.s32 %s72, 1
      %p76 = scmp.eq.s32.totalorder %s17, 1
      %p77 = scmp.ne.s32.totalorder %s72, %s74
      %p78 = scmp.eq.s32.totalorder %s17, 0
      %p79 = por %p77, %p78
      %p80 = scmp.ne.s32.totalorder %s72, %s74
      %p81 = scmp.eq.s32.totalorder %s22, 1
      %p82 = por %p80, %p81
      %p83 = scmp.ne.s32.totalorder %s74, %s75
      %p84 = scmp.eq.s32.totalorder %s22, 0
      %p85 = por %p83, %p84
      %p86 = scmp.ne.s32.totalorder %s74, %s75
      %p87 = scmp.eq.s32.totalorder %s23, 1
      %p88 = por %p86, %p87
      %p90 = scmp.ne.s32.totalorder %s75, %s89
      %p91 = scmp.eq.s32.totalorder %s23, 0
      %p92 = por %p90, %p91
      %s94 = sadd.s32 %s93, 1
      %p97 = scmp.eq.s32.totalorder %s17, 1
      %p98 = scmp.ne.s32.totalorder %s93, %s95
      %p99 = scmp.eq.s32.totalorder %s17, 0
      %p100 = por %p98, %p99
      %p101 = scmp.ne.s32.totalorder %s93, %s95
      %p102 = scmp.eq.s32.totalorder %s22, 1
      %p103 = por %p101, %p102
      %p104 = scmp.ne.s32.totalorder %s95, %s96
      %p105 = scmp.eq.s32.totalorder %s22, 0
      %p106 = por %p104, %p105
      %p107 = scmp.ne.s32.totalorder %s95, %s96
      %p108 = scmp.eq.s32.totalorder %s23, 1
      %p109 = por %p107, %p108
      %p111 = scmp.ne.s32.totalorder %s96, %s110
      %p112 = scmp.eq.s32.totalorder %s23, 0
      %p113 = por %p111, %p112
      %s115 = sadd.s32 %s114, 1
      %p118 = scmp.eq.s32.totalorder %s17, 1
      %p119 = scmp.ne.s32.totalorder %s114, %s116
      %p120 = scmp.eq.s32.totalorder %s17, 0
      %p121 = por %p119, %p120
      %p122 = scmp.ne.s32.totalorder %s114, %s116
      %p123 = scmp.eq.s32.totalorder %s22, 1
      %p124 = por %p122, %p123
      %p125 = scmp.ne.s32.totalorder %s116, %s117
      %p126 = scmp.eq.s32.totalorder %s22, 0
      %p127 = por %p125, %p126
      %p128 = scmp.ne.s32.totalorder %s116, %s117
      %p129 = scmp.eq.s32.totalorder %s23, 1
      %p130 = por %p128, %p129
      %p132 = scmp.ne.s32.totalorder %s117, %s131
      %p133 = scmp.eq.s32.totalorder %s23, 0
      %p134 = por %p132, %p133
      %s136 = sadd.s32 %s135, 1
      %p139 = scmp.eq.s32.totalorder %s17, 1
      %p140 = scmp.ne.s32.totalorder %s135, %s137
      %p141 = scmp.eq.s32.totalorder %s17, 0
      %p142 = por %p140, %p141
      %p143 = scmp.ne.s32.totalorder %s135, %s137
      %p144 = scmp.eq.s32.totalorder %s22, 1
      %p145 = por %p143, %p144
      %p146 = scmp.ne.s32.totalorder %s137, %s138
      %p147 = scmp.eq.s32.totalorder %s22, 0
      %p148 = por %p146, %p147
      %p149 = scmp.ne.s32.totalorder %s137, %s138
      %p150 = scmp.eq.s32.totalorder %s23, 1
      %p151 = por %p149, %p150
      %p153 = scmp.ne.s32.totalorder %s138, %s152
      %p154 = scmp.eq.s32.totalorder %s23, 0
      %p155 = por %p153, %p154
      %s156 = ssub.s32 %s17, %s24
      %p157 = scmp.eq.s32.totalorder %s156, 0
      %s159 = sadd.s32 %s158, 1
      %s160 = scalar_select %p157, %s158, %s159
      %p163 = pneg %p157
      %p164 = scmp.eq.s32.totalorder %s17, 1
      %p165 = por %p163, %p164
      %p166 = scmp.ne.s32.totalorder %s158, %s161
      %p167 = scmp.eq.s32.totalorder %s17, 0
      %p168 = por %p166, %p167
      %p169 = scmp.ne.s32.totalorder %s158, %s161
      %p170 = scmp.eq.s32.totalorder %s22, 1
      %p171 = por %p169, %p170
      %p172 = scmp.ne.s32.totalorder %s161, %s162
      %p173 = scmp.eq.s32.totalorder %s22, 0
      %p174 = por %p172, %p173
      %p175 = scmp.ne.s32.totalorder %s161, %s162
      %p176 = scmp.eq.s32.totalorder %s23, 1
      %p177 = por %p175, %p176
      %p179 = scmp.ne.s32.totalorder %s162, %s178
      %p180 = scmp.eq.s32.totalorder %s23, 0
      %p181 = por %p179, %p180
      %p182 = scmp.le.s32.totalorder 1, %s17
      %p183 = scmp.lt.s32.totalorder %s17, 3
      %p184 = pnand %p182, %p183
      %p185 = pneg %p184
      // Predicated region
      $region9: #{tpu_custom_call.1} parent=5 // pred_check
        _
      $region10: #{tpu_custom_call.1} parent=5 // pred_check_branch
        %187 = sbr.rel (%p184) target = $region12
      $region11: #{tpu_custom_call.1} parent=5 // pred_region
        %s188 = ssub.s32 %s17, 1
        // Predicated region
        $region13: #{tpu_custom_call.1} parent=11 // pred_check
          %p189 = pneg %p64
        $region14: #{tpu_custom_call.1} parent=11 // pred_check_branch
          %191 = sbr.rel (%p189) target = $region16
        $region15: #{tpu_custom_call.1} parent=11 // pred_region
          %193 = vsyncadd [#allocation3], 0
          %s194 = sshll.u32 %s1, 4
          %s195 = int_to_ptr.hbm [resolvable:$true] %s194
          %s196 = sshll.u32 [#allocation2], 4
          %s197 = int_to_ptr.vmem [resolvable:$true] %s196
          %202 = dma.hbm_to_vmem [thread:$0]  %s195, 896, %s197, [#allocation3], 128, 128, 8
        $region16: #{tpu_custom_call.1} parent=11 // pred_fallthru
          _
        // Predicated region
        $region17: #{tpu_custom_call.1} parent=11 // pred_check
          %p203 = pneg %p85
        $region18: #{tpu_custom_call.1} parent=11 // pred_check_branch
          %205 = sbr.rel (%p203) target = $region20
        $region19: #{tpu_custom_call.1} parent=11 // pred_region
          _
        $region20: #{tpu_custom_call.1} parent=11 // pred_fallthru
          _
        // Predicated region
        $region21: #{tpu_custom_call.1} parent=11 // pred_check
          %p206 = pneg %p106
        $region22: #{tpu_custom_call.1} parent=11 // pred_check_branch
          %208 = sbr.rel (%p206) target = $region24
        $region23: #{tpu_custom_call.1} parent=11 // pred_region
          _
        $region24: #{tpu_custom_call.1} parent=11 // pred_fallthru
          _
        // Predicated region
        $region25: #{tpu_custom_call.1} parent=11 // pred_check
          %p209 = pneg %p127
        $region26: #{tpu_custom_call.1} parent=11 // pred_check_branch
          %211 = sbr.rel (%p209) target = $region28
        $region27: #{tpu_custom_call.1} parent=11 // pred_region
          _
        $region28: #{tpu_custom_call.1} parent=11 // pred_fallthru
          _
        // Predicated region
        $region29: #{tpu_custom_call.1} parent=11 // pred_check
          %p212 = pneg %p148
        $region30: #{tpu_custom_call.1} parent=11 // pred_check_branch
          %214 = sbr.rel (%p212) target = $region32
        $region31: #{tpu_custom_call.1} parent=11 // pred_region
          %216 = vsyncadd [#allocation6], 0
          %s217 = sshll.u32 %s5, 4
          %s218 = int_to_ptr.hbm [resolvable:$true] %s217
          %s219 = sshll.u32 [#allocation5], 4
          %s220 = int_to_ptr.vmem [resolvable:$true] %s219
          %225 = dma.hbm_to_vmem [thread:$0]  %s218, 896, %s220, [#allocation6], 128, 128, 8
        $region32: #{tpu_custom_call.1} parent=11 // pred_fallthru
          _
      $region12: #{tpu_custom_call.1} parent=5 // pred_fallthru
        _
      %p226 = scmp.lt.s32.totalorder %s17, 2
      // Predicated region
      $region33: #{tpu_custom_call.1} parent=5 // pred_check
        %p227 = pneg %p226
      $region34: #{tpu_custom_call.1} parent=5 // pred_check_branch
        %229 = sbr.rel (%p227) target = $region36
      $region35: #{tpu_custom_call.1} parent=5 // pred_region
        // Predicated region
        $region37: #{tpu_custom_call.1} parent=35 // pred_check
          %p230 = pneg %p37
        $region38: #{tpu_custom_call.1} parent=35 // pred_check_branch
          %232 = sbr.rel (%p230) target = $region40
        $region39: #{tpu_custom_call.1} parent=35 // pred_region
          %p233 = scmp.lt.s32.totalorder %s17, 1
          %s234 = scalar_select %p233, %s17, 1
          %s235 = smul.addr %s234, 32
          %s236 = smul.addr %s235, 4
          %s237 = scalar_lea.vmem %s0, %s236
        $region40: #{tpu_custom_call.1} parent=35 // pred_fallthru
          _
      $region36: #{tpu_custom_call.1} parent=5 // pred_fallthru
        _
      %p238 = scmp.le.s32.totalorder 1, %s17
      %p239 = scmp.lt.s32.totalorder %s17, 3
      %p240 = pnand %p238, %p239
      %p241 = pneg %p240
      // Predicated region
      $region41: #{tpu_custom_call.1} parent=5 // pred_check
        _
      $region42: #{tpu_custom_call.1} parent=5 // pred_check_branch
        %243 = sbr.rel (%p240) target = $region44
      $region43: #{tpu_custom_call.1} parent=5 // pred_region
        %s244 = ssub.s32 %s17, 1
        // Predicated region
        $region45: #{tpu_custom_call.1} parent=43 // pred_check
          %p245 = pneg %p64
        $region46: #{tpu_custom_call.1} parent=43 // pred_check_branch
          %247 = sbr.rel (%p245) target = $region48
        $region47: #{tpu_custom_call.1} parent=43 // pred_region
          %249 = dma.done [#allocation3], 896
        $region48: #{tpu_custom_call.1} parent=43 // pred_fallthru
          _
        // Predicated region
        $region49: #{tpu_custom_call.1} parent=43 // pred_check
          %p250 = pneg %p148
        $region50: #{tpu_custom_call.1} parent=43 // pred_check_branch
          %252 = sbr.rel (%p250) target = $region52
        $region51: #{tpu_custom_call.1} parent=43 // pred_region
          %254 = dma.done [#allocation6], 896
        $region52: #{tpu_custom_call.1} parent=43 // pred_fallthru
          _
        %p255 = scmp.lt.s32.totalorder %s22, 1
        %s256 = scalar_select %p255, %s22, 1
        %s257 = smul.addr %s256, 32
        %s258 = smul.addr %s257, 4
        %s259 = scalar_lea.vmem %s0, %s258
        %p260 = pneg %p43
        %p261 = pneg %p40
        %p262 = pneg %p64
        %p263 = pneg %p61
        %p264 = pneg %p85
        %p265 = pneg %p82
        %p266 = pneg %p106
        %p267 = pneg %p103
        %p268 = pneg %p127
        %p269 = pneg %p124
        %p270 = pneg %p148
        %p271 = pneg %p145
        %p272 = pneg %p174
        %p273 = pneg %p171
        %s274 = sand.u32 %s161, 1
        %s275 = scalar_lea.sflag [#allocation4], %s274
        %s276 = sand.u32 %s161, 1
        %s277 = smul.addr %s276, 128
        %s278 = scalar_lea.vmem [#allocation7], %s277
        %p279 = scmp.lt.s32.totalorder %s22, 1
        %s280 = scalar_select %p279, %s22, 1
        %s281 = smul.addr %s280, 32
        %s282 = smul.addr %s281, 4
        %s283 = scalar_lea.vmem %s0, %s282
        %v285 = vld [vmem:[%s283] sm:$0xf]
        %v286 = vld [vmem:[%s283 + $0x4] sm:$0xf]
        %v287 = vld [vmem:[%s283 + $0x8] sm:$0xf]
        %v288 = vld [vmem:[%s283 + $0xc] sm:$0xf]
        %v289 = vld [vmem:[%s283 + $0x10] sm:$0xf]
        %v290 = vld [vmem:[%s283 + $0x14] sm:$0xf]
        %v291 = vld [vmem:[%s283 + $0x18] sm:$0xf]
        %v292 = vld [vmem:[%s283 + $0x1c] sm:$0xf]
        %v293 = vld [vmem:[%s283 + $0x20] sm:$0xf]
        %v294 = vld [vmem:[%s283 + $0x24] sm:$0xf]
        %v295 = vld [vmem:[%s283 + $0x28] sm:$0xf]
        %v296 = vld [vmem:[%s283 + $0x2c] sm:$0xf]
        %v297 = vld [vmem:[%s283 + $0x30] sm:$0xf]
        %v298 = vld [vmem:[%s283 + $0x34] sm:$0xf]
        %v299 = vld [vmem:[%s283 + $0x38] sm:$0xf]
        %v300 = vld [vmem:[%s283 + $0x3c] sm:$0xf]
        %v301 = vld [vmem:[%s283 + $0x40] sm:$0xf]
        %v302 = vld [vmem:[%s283 + $0x44] sm:$0xf]
        %v303 = vld [vmem:[%s283 + $0x48] sm:$0xf]
        %v304 = vld [vmem:[%s283 + $0x4c] sm:$0xf]
        %v305 = vld [vmem:[%s283 + $0x50] sm:$0xf]
        %v306 = vld [vmem:[%s283 + $0x54] sm:$0xf]
        %v307 = vld [vmem:[%s283 + $0x58] sm:$0xf]
        %v308 = vld [vmem:[%s283 + $0x5c] sm:$0xf]
        %v309 = vld [vmem:[%s283 + $0x60] sm:$0xf]
        %v310 = vld [vmem:[%s283 + $0x64] sm:$0xf]
        %v311 = vld [vmem:[%s283 + $0x68] sm:$0xf]
        %v312 = vld [vmem:[%s283 + $0x6c] sm:$0xf]
        %v313 = vld [vmem:[%s283 + $0x70] sm:$0xf]
        %v314 = vld [vmem:[%s283 + $0x74] sm:$0xf]
        %v315 = vld [vmem:[%s283 + $0x78] sm:$0xf]
        %v316 = vld [vmem:[%s283 + $0x7c] sm:$0xf]
        %v317 = vld [vmem:[#allocation2] sm:$0xff]
        %v318 = vld [vmem:[#allocation2 + $0x8] sm:$0xff]
        %v319 = vld [vmem:[#allocation2 + $0x10] sm:$0xff]
        %v320 = vld [vmem:[#allocation2 + $0x18] sm:$0xff]
        %v321 = vld [vmem:[#allocation2 + $0x20] sm:$0xff]
        %v322 = vld [vmem:[#allocation2 + $0x28] sm:$0xff]
        %v323 = vld [vmem:[#allocation2 + $0x30] sm:$0xff]
        %v331 = vunpack.c.l.b16 %v317
        %v332 = vunpack.c.h.b16 %v317
        %v333 = vunpack.c.l.b16 %v318
        %v334 = vunpack.c.h.b16 %v318
        %v335 = vunpack.c.l.b16 %v319
        %v336 = vunpack.c.h.b16 %v319
        %v337 = vunpack.c.l.b16 %v320
        %v338 = vunpack.c.h.b16 %v320
        %v339 = vunpack.c.l.b16 %v321
        %v340 = vunpack.c.h.b16 %v321
        %v341 = vunpack.c.l.b16 %v322
        %v342 = vunpack.c.h.b16 %v322
        %v343 = vunpack.c.l.b16 %v323
        %v344 = vunpack.c.h.b16 %v323
        %v345 = vpack.c.b16 %v333, %v331
        %v346 = vpack.c.b16 %v334, %v332
        %v347 = vpack.c.b16 %v337, %v335
        %v348 = vpack.c.b16 %v338, %v336
        %v349 = vpack.c.b16 %v341, %v339
        %v350 = vpack.c.b16 %v342, %v340
        %v351 = vpack.c.b16 %v343, %v343
        %v352 = vpack.c.b16 %v344, %v344
        %v393 = vunpack.c.l.b16 %v285
        %v394 = vunpack.c.l.b16 %v286
        %v395 = vunpack.c.l.b16 %v287
        %v396 = vunpack.c.l.b16 %v288
        %v397 = vunpack.c.l.b16 %v289
        %v398 = vunpack.c.l.b16 %v290
        %v399 = vunpack.c.l.b16 %v291
        %v400 = vunpack.c.l.b16 %v292
        %v401 = vunpack.c.l.b16 %v293
        %v402 = vunpack.c.l.b16 %v294
        %v403 = vunpack.c.l.b16 %v295
        %v404 = vunpack.c.l.b16 %v296
        %v405 = vunpack.c.l.b16 %v297
        %v406 = vunpack.c.l.b16 %v298
        %v407 = vunpack.c.l.b16 %v299
        %v408 = vunpack.c.l.b16 %v300
        %v409 = vunpack.c.l.b16 %v301
        %v410 = vunpack.c.l.b16 %v302
        %v411 = vunpack.c.l.b16 %v303
        %v412 = vunpack.c.l.b16 %v304
        %v413 = vunpack.c.l.b16 %v305
        %v414 = vunpack.c.l.b16 %v306
        %v415 = vunpack.c.l.b16 %v307
        %v416 = vunpack.c.l.b16 %v308
        %v417 = vunpack.c.l.b16 %v309
        %v418 = vunpack.c.l.b16 %v310
        %v419 = vunpack.c.l.b16 %v311
        %v420 = vunpack.c.l.b16 %v312
        %v421 = vunpack.c.l.b16 %v313
        %v422 = vunpack.c.l.b16 %v314
        %v423 = vunpack.c.l.b16 %v315
        %v424 = vunpack.c.l.b16 %v316
        %v425 = vpack.c.b16 %v394, %v393
        %v426 = vpack.c.b16 %v396, %v395
        %v427 = vpack.c.b16 %v398, %v397
        %v428 = vpack.c.b16 %v400, %v399
        %v429 = vpack.c.b16 %v402, %v401
        %v430 = vpack.c.b16 %v404, %v403
        %v431 = vpack.c.b16 %v406, %v405
        %v432 = vpack.c.b16 %v408, %v407
        %v433 = vpack.c.b16 %v410, %v409
        %v434 = vpack.c.b16 %v412, %v411
        %v435 = vpack.c.b16 %v414, %v413
        %v436 = vpack.c.b16 %v416, %v415
        %v437 = vpack.c.b16 %v418, %v417
        %v438 = vpack.c.b16 %v420, %v419
        %v439 = vpack.c.b16 %v422, %v421
        %v440 = vpack.c.b16 %v424, %v423
        %457 = vmatpush.bf16.msra.mxu0 %v432
        %458 = vmatpush.bf16.msra.mxu0 %v431
        %459 = vmatpush.bf16.msra.mxu0 %v430
        %460 = vmatpush.bf16.msra.mxu0 %v429
        %461 = vmatpush.bf16.msra.mxu0 %v428
        %462 = vmatpush.bf16.msra.mxu0 %v427
        %463 = vmatpush.bf16.msra.mxu0 %v426
        %464 = vmatpush.bf16.msra.mxu0 %v425
        %465 = vmatmul.bf16.gmra.mxu0 %v345
        %v466 = vpop.f32.mrf.mxu0
        %v467 = vadd.f32 0.0, %v466
        %v468 = vpop.f32.mrf.mxu0
        %v469 = vadd.f32 0.0, %v468
        %470 = vmatmul.bf16.gmra.mxu0 %v347
        %v471 = vpop.f32.mrf.mxu0
        %v472 = vadd.f32 0.0, %v471
        %v473 = vpop.f32.mrf.mxu0
        %v474 = vadd.f32 0.0, %v473
        %475 = vmatmul.bf16.gmra.mxu0 %v349
        %v476 = vpop.f32.mrf.mxu0
        %v477 = vadd.f32 0.0, %v476
        %v478 = vpop.f32.mrf.mxu0
        %v479 = vadd.f32 0.0, %v478
        %480 = vmatmul.bf16.gmra.mxu0 %v351
        %v481 = vpop.f32.mrf.mxu0
        %v482 = vadd.f32 0.0, %v481
        %v483 = vpop.f32.mrf.mxu0
        %484 = vdwg.mxu0
        %485 = vmatpush.bf16.msra.mxu0 %v440
        %486 = vmatpush.bf16.msra.mxu0 %v439
        %487 = vmatpush.bf16.msra.mxu0 %v438
        %488 = vmatpush.bf16.msra.mxu0 %v437
        %489 = vmatpush.bf16.msra.mxu0 %v436
        %490 = vmatpush.bf16.msra.mxu0 %v435
        %491 = vmatpush.bf16.msra.mxu0 %v434
        %492 = vmatpush.bf16.msra.mxu0 %v433
        %493 = vmatmul.bf16.gmra.mxu0 %v346
        %v494 = vpop.f32.mrf.mxu0
        %v495 = vadd.f32 %v467, %v494
        %v496 = vpop.f32.mrf.mxu0
        %v497 = vadd.f32 %v469, %v496
        %498 = vmatmul.bf16.gmra.mxu0 %v348
        %v499 = vpop.f32.mrf.mxu0
        %v500 = vadd.f32 %v472, %v499
        %v501 = vpop.f32.mrf.mxu0
        %v502 = vadd.f32 %v474, %v501
        %503 = vmatmul.bf16.gmra.mxu0 %v350
        %v504 = vpop.f32.mrf.mxu0
        %v505 = vadd.f32 %v477, %v504
        %v506 = vpop.f32.mrf.mxu0
        %v507 = vadd.f32 %v479, %v506
        %508 = vmatmul.bf16.gmra.mxu0 %v352
        %v509 = vpop.f32.mrf.mxu0
        %v510 = vadd.f32 %v482, %v509
        %v511 = vpop.f32.mrf.mxu0
        %512 = vdwg.mxu0
        %v513 = vpack.c.bf16 %v497, %v495
        %v514 = vpack.c.bf16 %v502, %v500
        %v515 = vpack.c.bf16 %v507, %v505
        %v516 = vpack.c.bf16 %v510, %v510
        %v517 = vld [vmem:[%s3] sm:$0xf]
        %v518 = vld [vmem:[%s3 + $0x4] sm:$0xf]
        %v519 = vld [vmem:[%s3 + $0x8] sm:$0xf]
        %v520 = vld [vmem:[%s3 + $0xc] sm:$0xf]
        %v521 = vld [vmem:[%s3 + $0x10] sm:$0xf]
        %v522 = vld [vmem:[%s3 + $0x14] sm:$0xf]
        %v523 = vld [vmem:[%s3 + $0x18] sm:$0xf]
        %v524 = vld [vmem:[%s3 + $0x1c] sm:$0xf]
        %v525 = vld [vmem:[%s3 + $0x20] sm:$0xf]
        %v526 = vld [vmem:[%s3 + $0x24] sm:$0xf]
        %v527 = vld [vmem:[%s3 + $0x28] sm:$0xf]
        %v528 = vld [vmem:[%s3 + $0x2c] sm:$0xf]
        %v529 = vld [vmem:[%s3 + $0x30] sm:$0xf]
        %v530 = vld [vmem:[%s3 + $0x34] sm:$0xf]
        %v531 = vld [vmem:[%s3 + $0x38] sm:$0xf]
        %v532 = vld [vmem:[%s3 + $0x3c] sm:$0xf]
        %v533 = vld [vmem:[%s4] sm:$0x1]
        %v535 = vperm.slane %v533, 0
        %v553 = vunpack.c.l.b16 %v517
        %v554 = vunpack.c.l.b16 %v518
        %v555 = vunpack.c.l.b16 %v519
        %v556 = vunpack.c.l.b16 %v520
        %v557 = vunpack.c.l.b16 %v521
        %v558 = vunpack.c.l.b16 %v522
        %v559 = vunpack.c.l.b16 %v523
        %v560 = vunpack.c.l.b16 %v524
        %v561 = vunpack.c.l.b16 %v525
        %v562 = vunpack.c.l.b16 %v526
        %v563 = vunpack.c.l.b16 %v527
        %v564 = vunpack.c.l.b16 %v528
        %v565 = vunpack.c.l.b16 %v529
        %v566 = vunpack.c.l.b16 %v530
        %v567 = vunpack.c.l.b16 %v531
        %v568 = vunpack.c.l.b16 %v532
        %v569 = vpack.c.b16 %v554, %v553
        %v570 = vpack.c.b16 %v556, %v555
        %v571 = vpack.c.b16 %v558, %v557
        %v572 = vpack.c.b16 %v560, %v559
        %v573 = vpack.c.b16 %v562, %v561
        %v574 = vpack.c.b16 %v564, %v563
        %v575 = vpack.c.b16 %v566, %v565
        %v576 = vpack.c.b16 %v568, %v567
        %585 = vmatpush.bf16.msra.mxu0 %v576
        %586 = vmatpush.bf16.msra.mxu0 %v575
        %587 = vmatpush.bf16.msra.mxu0 %v574
        %588 = vmatpush.bf16.msra.mxu0 %v573
        %589 = vmatpush.bf16.msra.mxu0 %v572
        %590 = vmatpush.bf16.msra.mxu0 %v571
        %591 = vmatpush.bf16.msra.mxu0 %v570
        %592 = vmatpush.bf16.msra.mxu0 %v569
        %593 = vmatmul.bf16.gmra.mxu0 %v513
        %v594 = vpop.f32.mrf.mxu0
        %v595 = vadd.f32 %v535, %v594
        %v596 = vpop.f32.mrf.mxu0
        %v597 = vadd.f32 %v535, %v596
        %598 = vmatmul.bf16.gmra.mxu0 %v514
        %v599 = vpop.f32.mrf.mxu0
        %v600 = vadd.f32 %v535, %v599
        %v601 = vpop.f32.mrf.mxu0
        %v602 = vadd.f32 %v535, %v601
        %603 = vmatmul.bf16.gmra.mxu0 %v515
        %v604 = vpop.f32.mrf.mxu0
        %v605 = vadd.f32 %v535, %v604
        %v606 = vpop.f32.mrf.mxu0
        %v607 = vadd.f32 %v535, %v606
        %608 = vmatmul.bf16.gmra.mxu0 %v516
        %v609 = vpop.f32.mrf.mxu0
        %v610 = vadd.f32 %v535, %v609
        %v611 = vpop.f32.mrf.mxu0
        %612 = vdwg.mxu0
        %vm613 = vcmp.gt.f32.partialorder %v595, 0.0
        %vm614 = vcmp.gt.f32.partialorder %v597, 0.0
        %vm615 = vcmp.gt.f32.partialorder %v600, 0.0
        %vm616 = vcmp.gt.f32.partialorder %v602, 0.0
        %vm617 = vcmp.gt.f32.partialorder %v605, 0.0
        %vm618 = vcmp.gt.f32.partialorder %v607, 0.0
        %vm619 = vcmp.gt.f32.partialorder %v610, 0.0
        %v620 = vmul.f32 %v595, 0.01
        %v621 = vmul.f32 %v597, 0.01
        %v622 = vmul.f32 %v600, 0.01
        %v623 = vmul.f32 %v602, 0.01
        %v624 = vmul.f32 %v605, 0.01
        %v625 = vmul.f32 %v607, 0.01
        %v626 = vmul.f32 %v610, 0.01
        %v627 = vsel %vm613, %v595, %v620
        %v628 = vsel %vm614, %v597, %v621
        %v629 = vsel %vm615, %v600, %v622
        %v630 = vsel %vm616, %v602, %v623
        %v631 = vsel %vm617, %v605, %v624
        %v632 = vsel %vm618, %v607, %v625
        %v633 = vsel %vm619, %v610, %v626
        %v634 = vld [vmem:[#allocation5] sm:$0xff]
        %v635 = vld [vmem:[#allocation5 + $0x8] sm:$0xff]
        %v636 = vld [vmem:[#allocation5 + $0x10] sm:$0xff]
        %v637 = vld [vmem:[#allocation5 + $0x18] sm:$0xff]
        %v638 = vld [vmem:[#allocation5 + $0x20] sm:$0xff]
        %v639 = vld [vmem:[#allocation5 + $0x28] sm:$0xff]
        %v640 = vld [vmem:[#allocation5 + $0x30] sm:$0xff]
        %v641 = vmul.f32 %v627, %v634
        %v642 = vmul.f32 %v628, %v635
        %v643 = vmul.f32 %v629, %v636
        %v644 = vmul.f32 %v630, %v637
        %v645 = vmul.f32 %v631, %v638
        %v646 = vmul.f32 %v632, %v639
        %v647 = vmul.f32 %v633, %v640
        %v648 = vld [vmem:[%s2] sm:$0xf]
        %v649 = vld [vmem:[%s2 + $0x4] sm:$0xf]
        %v650 = vld [vmem:[%s2 + $0x8] sm:$0xf]
        %v651 = vld [vmem:[%s2 + $0xc] sm:$0xf]
        %v652 = vld [vmem:[%s2 + $0x10] sm:$0xf]
        %v653 = vld [vmem:[%s2 + $0x14] sm:$0xf]
        %v654 = vld [vmem:[%s2 + $0x18] sm:$0xf]
        %v655 = vld [vmem:[%s2 + $0x1c] sm:$0xf]
        %v656 = vld [vmem:[%s2 + $0x20] sm:$0xf]
        %v657 = vld [vmem:[%s2 + $0x24] sm:$0xf]
        %v658 = vld [vmem:[%s2 + $0x28] sm:$0xf]
        %v659 = vld [vmem:[%s2 + $0x2c] sm:$0xf]
        %v660 = vld [vmem:[%s2 + $0x30] sm:$0xf]
        %v661 = vld [vmem:[%s2 + $0x34] sm:$0xf]
        %v662 = vld [vmem:[%s2 + $0x38] sm:$0xf]
        %v663 = vld [vmem:[%s2 + $0x3c] sm:$0xf]
        %v664 = vld [vmem:[%s2 + $0x40] sm:$0xf]
        %v665 = vld [vmem:[%s2 + $0x44] sm:$0xf]
        %v666 = vld [vmem:[%s2 + $0x48] sm:$0xf]
        %v667 = vld [vmem:[%s2 + $0x4c] sm:$0xf]
        %v668 = vld [vmem:[%s2 + $0x50] sm:$0xf]
        %v669 = vld [vmem:[%s2 + $0x54] sm:$0xf]
        %v670 = vld [vmem:[%s2 + $0x58] sm:$0xf]
        %v671 = vld [vmem:[%s2 + $0x5c] sm:$0xf]
        %v672 = vld [vmem:[%s2 + $0x60] sm:$0xf]
        %v673 = vld [vmem:[%s2 + $0x64] sm:$0xf]
        %v674 = vld [vmem:[%s2 + $0x68] sm:$0xf]
        %v675 = vld [vmem:[%s2 + $0x6c] sm:$0xf]
        %v676 = vld [vmem:[%s2 + $0x70] sm:$0xf]
        %v677 = vld [vmem:[%s2 + $0x74] sm:$0xf]
        %v678 = vld [vmem:[%s2 + $0x78] sm:$0xf]
        %v679 = vld [vmem:[%s2 + $0x7c] sm:$0xf]
        %v680 = vpack.c.bf16 %v642, %v641
        %v681 = vpack.c.bf16 %v644, %v643
        %v682 = vpack.c.bf16 %v646, %v645
        %v683 = vpack.c.bf16 %v647, %v647
        %v716 = vunpack.c.l.b16 %v648
        %v717 = vunpack.c.l.b16 %v649
        %v718 = vunpack.c.l.b16 %v650
        %v719 = vunpack.c.l.b16 %v651
        %v720 = vunpack.c.l.b16 %v652
        %v721 = vunpack.c.l.b16 %v653
        %v722 = vunpack.c.l.b16 %v654
        %v723 = vunpack.c.l.b16 %v655
        %v724 = vunpack.c.l.b16 %v656
        %v725 = vunpack.c.l.b16 %v657
        %v726 = vunpack.c.l.b16 %v658
        %v727 = vunpack.c.l.b16 %v659
        %v728 = vunpack.c.l.b16 %v660
        %v729 = vunpack.c.l.b16 %v661
        %v730 = vunpack.c.l.b16 %v662
        %v731 = vunpack.c.l.b16 %v663
        %v732 = vunpack.c.l.b16 %v664
        %v733 = vunpack.c.l.b16 %v665
        %v734 = vunpack.c.l.b16 %v666
        %v735 = vunpack.c.l.b16 %v667
        %v736 = vunpack.c.l.b16 %v668
        %v737 = vunpack.c.l.b16 %v669
        %v738 = vunpack.c.l.b16 %v670
        %v739 = vunpack.c.l.b16 %v671
        %v740 = vunpack.c.l.b16 %v672
        %v741 = vunpack.c.l.b16 %v673
        %v742 = vunpack.c.l.b16 %v674
        %v743 = vunpack.c.l.b16 %v675
        %v744 = vunpack.c.l.b16 %v676
        %v745 = vunpack.c.l.b16 %v677
        %v746 = vunpack.c.l.b16 %v678
        %v747 = vunpack.c.l.b16 %v679
        %v748 = vpack.c.b16 %v717, %v716
        %v749 = vpack.c.b16 %v719, %v718
        %v750 = vpack.c.b16 %v721, %v720
        %v751 = vpack.c.b16 %v723, %v722
        %v752 = vpack.c.b16 %v725, %v724
        %v753 = vpack.c.b16 %v727, %v726
        %v754 = vpack.c.b16 %v729, %v728
        %v755 = vpack.c.b16 %v731, %v730
        %v756 = vpack.c.b16 %v733, %v732
        %v757 = vpack.c.b16 %v735, %v734
        %v758 = vpack.c.b16 %v737, %v736
        %v759 = vpack.c.b16 %v739, %v738
        %v760 = vpack.c.b16 %v741, %v740
        %v761 = vpack.c.b16 %v743, %v742
        %v762 = vpack.c.b16 %v745, %v744
        %v763 = vpack.c.b16 %v747, %v746
        %vm764 = vcmask 457728
        %v766 = vsel %vm764, %v748, 0
        %v769 = vsel %vm764, %v749, 0
        %v772 = vsel %vm764, %v750, 0
        %v775 = vsel %vm764, %v751, 0
        %v778 = vsel %vm764, %v752, 0
        %v781 = vsel %vm764, %v753, 0
        %v784 = vsel %vm764, %v754, 0
        %v787 = vsel %vm764, %v755, 0
        %v790 = vsel %vm764, %v756, 0
        %v793 = vsel %vm764, %v757, 0
        %v796 = vsel %vm764, %v758, 0
        %v799 = vsel %vm764, %v759, 0
        %v802 = vsel %vm764, %v760, 0
        %v805 = vsel %vm764, %v761, 0
        %v808 = vsel %vm764, %v762, 0
        %v811 = vsel %vm764, %v763, 0
        %vm813 = vcmask 1043456
        %v815 = vsel %vm813, %v683, 0
        %817 = vmatpush.bf16.msra.mxu0 0
        %818 = vmatpush.bf16.msra.mxu0 0
        %819 = vmatpush.bf16.msra.mxu0 0
        %820 = vmatpush.bf16.msra.mxu0 0
        %821 = vmatpush.bf16.msra.mxu0 %v815
        %822 = vmatpush.bf16.msra.mxu0 %v682
        %823 = vmatpush.bf16.msra.mxu0 %v681
        %824 = vmatpush.bf16.msra.mxu0 %v680
        %825 = vmatmul.bf16.gmra.mxu0 %v766
        %v826 = vpop.f32.mrf.mxu0
        %v827 = vadd.f32 0.0, %v826
        %v828 = vpop.f32.mrf.mxu0
        %v829 = vadd.f32 0.0, %v828
        %830 = vmatmul.bf16.gmra.mxu0 %v769
        %v831 = vpop.f32.mrf.mxu0
        %v832 = vadd.f32 0.0, %v831
        %v833 = vpop.f32.mrf.mxu0
        %v834 = vadd.f32 0.0, %v833
        %835 = vmatmul.bf16.gmra.mxu0 %v772
        %v836 = vpop.f32.mrf.mxu0
        %v837 = vadd.f32 0.0, %v836
        %v838 = vpop.f32.mrf.mxu0
        %v839 = vadd.f32 0.0, %v838
        %840 = vmatmul.bf16.gmra.mxu0 %v775
        %v841 = vpop.f32.mrf.mxu0
        %v842 = vadd.f32 0.0, %v841
        %v843 = vpop.f32.mrf.mxu0
        %v844 = vadd.f32 0.0, %v843
        %845 = vmatmul.bf16.gmra.mxu0 %v778
        %v846 = vpop.f32.mrf.mxu0
        %v847 = vadd.f32 0.0, %v846
        %v848 = vpop.f32.mrf.mxu0
        %v849 = vadd.f32 0.0, %v848
        %850 = vmatmul.bf16.gmra.mxu0 %v781
        %v851 = vpop.f32.mrf.mxu0
        %v852 = vadd.f32 0.0, %v851
        %v853 = vpop.f32.mrf.mxu0
        %v854 = vadd.f32 0.0, %v853
        %855 = vmatmul.bf16.gmra.mxu0 %v784
        %v856 = vpop.f32.mrf.mxu0
        %v857 = vadd.f32 0.0, %v856
        %v858 = vpop.f32.mrf.mxu0
        %v859 = vadd.f32 0.0, %v858
        %860 = vmatmul.bf16.gmra.mxu0 %v787
        %v861 = vpop.f32.mrf.mxu0
        %v862 = vadd.f32 0.0, %v861
        %v863 = vpop.f32.mrf.mxu0
        %v864 = vadd.f32 0.0, %v863
        %865 = vmatmul.bf16.gmra.mxu0 %v790
        %v866 = vpop.f32.mrf.mxu0
        %v867 = vadd.f32 0.0, %v866
        %v868 = vpop.f32.mrf.mxu0
        %v869 = vadd.f32 0.0, %v868
        %870 = vmatmul.bf16.gmra.mxu0 %v793
        %v871 = vpop.f32.mrf.mxu0
        %v872 = vadd.f32 0.0, %v871
        %v873 = vpop.f32.mrf.mxu0
        %v874 = vadd.f32 0.0, %v873
        %875 = vmatmul.bf16.gmra.mxu0 %v796
        %v876 = vpop.f32.mrf.mxu0
        %v877 = vadd.f32 0.0, %v876
        %v878 = vpop.f32.mrf.mxu0
        %v879 = vadd.f32 0.0, %v878
        %880 = vmatmul.bf16.gmra.mxu0 %v799
        %v881 = vpop.f32.mrf.mxu0
        %v882 = vadd.f32 0.0, %v881
        %v883 = vpop.f32.mrf.mxu0
        %v884 = vadd.f32 0.0, %v883
        %885 = vmatmul.bf16.gmra.mxu0 %v802
        %v886 = vpop.f32.mrf.mxu0
        %v887 = vadd.f32 0.0, %v886
        %v888 = vpop.f32.mrf.mxu0
        %v889 = vadd.f32 0.0, %v888
        %890 = vmatmul.bf16.gmra.mxu0 %v805
        %v891 = vpop.f32.mrf.mxu0
        %v892 = vadd.f32 0.0, %v891
        %v893 = vpop.f32.mrf.mxu0
        %v894 = vadd.f32 0.0, %v893
        %895 = vmatmul.bf16.gmra.mxu0 %v808
        %v896 = vpop.f32.mrf.mxu0
        %v897 = vadd.f32 0.0, %v896
        %v898 = vpop.f32.mrf.mxu0
        %v899 = vadd.f32 0.0, %v898
        %900 = vmatmul.bf16.gmra.mxu0 %v811
        %v901 = vpop.f32.mrf.mxu0
        %v902 = vadd.f32 0.0, %v901
        %v903 = vpop.f32.mrf.mxu0
        %v904 = vadd.f32 0.0, %v903
        %905 = vdwg.mxu0
        %v906 = vpack.c.bf16 %v827, %v827
        %v907 = vpack.c.bf16 %v829, %v829
        %v908 = vpack.c.bf16 %v832, %v832
        %v909 = vpack.c.bf16 %v834, %v834
        %v910 = vpack.c.bf16 %v837, %v837
        %v911 = vpack.c.bf16 %v839, %v839
        %v912 = vpack.c.bf16 %v842, %v842
        %v913 = vpack.c.bf16 %v844, %v844
        %v914 = vpack.c.bf16 %v847, %v847
        %v915 = vpack.c.bf16 %v849, %v849
        %v916 = vpack.c.bf16 %v852, %v852
        %v917 = vpack.c.bf16 %v854, %v854
        %v918 = vpack.c.bf16 %v857, %v857
        %v919 = vpack.c.bf16 %v859, %v859
        %v920 = vpack.c.bf16 %v862, %v862
        %v921 = vpack.c.bf16 %v864, %v864
        %v922 = vpack.c.bf16 %v867, %v867
        %v923 = vpack.c.bf16 %v869, %v869
        %v924 = vpack.c.bf16 %v872, %v872
        %v925 = vpack.c.bf16 %v874, %v874
        %v926 = vpack.c.bf16 %v877, %v877
        %v927 = vpack.c.bf16 %v879, %v879
        %v928 = vpack.c.bf16 %v882, %v882
        %v929 = vpack.c.bf16 %v884, %v884
        %v930 = vpack.c.bf16 %v887, %v887
        %v931 = vpack.c.bf16 %v889, %v889
        %v932 = vpack.c.bf16 %v892, %v892
        %v933 = vpack.c.bf16 %v894, %v894
        %v934 = vpack.c.bf16 %v897, %v897
        %v935 = vpack.c.bf16 %v899, %v899
        %v936 = vpack.c.bf16 %v902, %v902
        %v937 = vpack.c.bf16 %v904, %v904
        %vm938 = vcmask 519168
        %939 = vst.msk [vmem:[%s278] sm:$0xf] %vm938, %v906
        %940 = vst.msk [vmem:[%s278 + $0x4] sm:$0xf] %vm938, %v907
        %941 = vst.msk [vmem:[%s278 + $0x8] sm:$0xf] %vm938, %v908
        %942 = vst.msk [vmem:[%s278 + $0xc] sm:$0xf] %vm938, %v909
        %943 = vst.msk [vmem:[%s278 + $0x10] sm:$0xf] %vm938, %v910
        %944 = vst.msk [vmem:[%s278 + $0x14] sm:$0xf] %vm938, %v911
        %945 = vst.msk [vmem:[%s278 + $0x18] sm:$0xf] %vm938, %v912
        %946 = vst.msk [vmem:[%s278 + $0x1c] sm:$0xf] %vm938, %v913
        %947 = vst.msk [vmem:[%s278 + $0x20] sm:$0xf] %vm938, %v914
        %948 = vst.msk [vmem:[%s278 + $0x24] sm:$0xf] %vm938, %v915
        %949 = vst.msk [vmem:[%s278 + $0x28] sm:$0xf] %vm938, %v916
        %950 = vst.msk [vmem:[%s278 + $0x2c] sm:$0xf] %vm938, %v917
        %951 = vst.msk [vmem:[%s278 + $0x30] sm:$0xf] %vm938, %v918
        %952 = vst.msk [vmem:[%s278 + $0x34] sm:$0xf] %vm938, %v919
        %953 = vst.msk [vmem:[%s278 + $0x38] sm:$0xf] %vm938, %v920
        %954 = vst.msk [vmem:[%s278 + $0x3c] sm:$0xf] %vm938, %v921
        %955 = vst.msk [vmem:[%s278 + $0x40] sm:$0xf] %vm938, %v922
        %956 = vst.msk [vmem:[%s278 + $0x44] sm:$0xf] %vm938, %v923
        %957 = vst.msk [vmem:[%s278 + $0x48] sm:$0xf] %vm938, %v924
        %958 = vst.msk [vmem:[%s278 + $0x4c] sm:$0xf] %vm938, %v925
        %959 = vst.msk [vmem:[%s278 + $0x50] sm:$0xf] %vm938, %v926
        %960 = vst.msk [vmem:[%s278 + $0x54] sm:$0xf] %vm938, %v927
        %961 = vst.msk [vmem:[%s278 + $0x58] sm:$0xf] %vm938, %v928
        %962 = vst.msk [vmem:[%s278 + $0x5c] sm:$0xf] %vm938, %v929
        %963 = vst.msk [vmem:[%s278 + $0x60] sm:$0xf] %vm938, %v930
        %964 = vst.msk [vmem:[%s278 + $0x64] sm:$0xf] %vm938, %v931
        %965 = vst.msk [vmem:[%s278 + $0x68] sm:$0xf] %vm938, %v932
        %966 = vst.msk [vmem:[%s278 + $0x6c] sm:$0xf] %vm938, %v933
        %967 = vst.msk [vmem:[%s278 + $0x70] sm:$0xf] %vm938, %v934
        %968 = vst.msk [vmem:[%s278 + $0x74] sm:$0xf] %vm938, %v935
        %969 = vst.msk [vmem:[%s278 + $0x78] sm:$0xf] %vm938, %v936
        %970 = vst.msk [vmem:[%s278 + $0x7c] sm:$0xf] %vm938, %v937
        %971 = vrot.lane.b32.xlu0 %v285, 64
        %v972 = vpop.permute.xlu0 %971
        %973 = vrot.lane.b32.xlu0 %v286, 64
        %v974 = vpop.permute.xlu0 %973
        %975 = vrot.lane.b32.xlu0 %v287, 64
        %v976 = vpop.permute.xlu0 %975
        %977 = vrot.lane.b32.xlu0 %v288, 64
        %v978 = vpop.permute.xlu0 %977
        %979 = vrot.lane.b32.xlu0 %v289, 64
        %v980 = vpop.permute.xlu0 %979
        %981 = vrot.lane.b32.xlu0 %v290, 64
        %v982 = vpop.permute.xlu0 %981
        %983 = vrot.lane.b32.xlu0 %v291, 64
        %v984 = vpop.permute.xlu0 %983
        %985 = vrot.lane.b32.xlu0 %v292, 64
        %v986 = vpop.permute.xlu0 %985
        %987 = vrot.lane.b32.xlu0 %v293, 64
        %v988 = vpop.permute.xlu0 %987
        %989 = vrot.lane.b32.xlu0 %v294, 64
        %v990 = vpop.permute.xlu0 %989
        %991 = vrot.lane.b32.xlu0 %v295, 64
        %v992 = vpop.permute.xlu0 %991
        %993 = vrot.lane.b32.xlu0 %v296, 64
        %v994 = vpop.permute.xlu0 %993
        %995 = vrot.lane.b32.xlu0 %v297, 64
        %v996 = vpop.permute.xlu0 %995
        %997 = vrot.lane.b32.xlu0 %v298, 64
        %v998 = vpop.permute.xlu0 %997
        %999 = vrot.lane.b32.xlu0 %v299, 64
        %v1000 = vpop.permute.xlu0 %999
        %1001 = vrot.lane.b32.xlu0 %v300, 64
        %v1002 = vpop.permute.xlu0 %1001
        %1003 = vrot.lane.b32.xlu0 %v301, 64
        %v1004 = vpop.permute.xlu0 %1003
        %1005 = vrot.lane.b32.xlu0 %v302, 64
        %v1006 = vpop.permute.xlu0 %1005
        %1007 = vrot.lane.b32.xlu0 %v303, 64
        %v1008 = vpop.permute.xlu0 %1007
        %1009 = vrot.lane.b32.xlu0 %v304, 64
        %v1010 = vpop.permute.xlu0 %1009
        %1011 = vrot.lane.b32.xlu0 %v305, 64
        %v1012 = vpop.permute.xlu0 %1011
        %1013 = vrot.lane.b32.xlu0 %v306, 64
        %v1014 = vpop.permute.xlu0 %1013
        %1015 = vrot.lane.b32.xlu0 %v307, 64
        %v1016 = vpop.permute.xlu0 %1015
        %1017 = vrot.lane.b32.xlu0 %v308, 64
        %v1018 = vpop.permute.xlu0 %1017
        %1019 = vrot.lane.b32.xlu0 %v309, 64
        %v1020 = vpop.permute.xlu0 %1019
        %1021 = vrot.lane.b32.xlu0 %v310, 64
        %v1022 = vpop.permute.xlu0 %1021
        %1023 = vrot.lane.b32.xlu0 %v311, 64
        %v1024 = vpop.permute.xlu0 %1023
        %1025 = vrot.lane.b32.xlu0 %v312, 64
        %v1026 = vpop.permute.xlu0 %1025
        %1027 = vrot.lane.b32.xlu0 %v313, 64
        %v1028 = vpop.permute.xlu0 %1027
        %1029 = vrot.lane.b32.xlu0 %v314, 64
        %v1030 = vpop.permute.xlu0 %1029
        %1031 = vrot.lane.b32.xlu0 %v315, 64
        %v1032 = vpop.permute.xlu0 %1031
        %1033 = vrot.lane.b32.xlu0 %v316, 64
        %v1034 = vpop.permute.xlu0 %1033
        %vm1067 = vcmask 585216
        %1068 = vst.msk [vmem:[%s278] sm:$0xf] %vm1067, %v972
        %1069 = vst.msk [vmem:[%s278 + $0x4] sm:$0xf] %vm1067, %v974
        %1070 = vst.msk [vmem:[%s278 + $0x8] sm:$0xf] %vm1067, %v976
        %1071 = vst.msk [vmem:[%s278 + $0xc] sm:$0xf] %vm1067, %v978
        %1072 = vst.msk [vmem:[%s278 + $0x10] sm:$0xf] %vm1067, %v980
        %1073 = vst.msk [vmem:[%s278 + $0x14] sm:$0xf] %vm1067, %v982
        %1074 = vst.msk [vmem:[%s278 + $0x18] sm:$0xf] %vm1067, %v984
        %1075 = vst.msk [vmem:[%s278 + $0x1c] sm:$0xf] %vm1067, %v986
        %1076 = vst.msk [vmem:[%s278 + $0x20] sm:$0xf] %vm1067, %v988
        %1077 = vst.msk [vmem:[%s278 + $0x24] sm:$0xf] %vm1067, %v990
        %1078 = vst.msk [vmem:[%s278 + $0x28] sm:$0xf] %vm1067, %v992
        %1079 = vst.msk [vmem:[%s278 + $0x2c] sm:$0xf] %vm1067, %v994
        %1080 = vst.msk [vmem:[%s278 + $0x30] sm:$0xf] %vm1067, %v996
        %1081 = vst.msk [vmem:[%s278 + $0x34] sm:$0xf] %vm1067, %v998
        %1082 = vst.msk [vmem:[%s278 + $0x38] sm:$0xf] %vm1067, %v1000
        %1083 = vst.msk [vmem:[%s278 + $0x3c] sm:$0xf] %vm1067, %v1002
        %1084 = vst.msk [vmem:[%s278 + $0x40] sm:$0xf] %vm1067, %v1004
        %1085 = vst.msk [vmem:[%s278 + $0x44] sm:$0xf] %vm1067, %v1006
        %1086 = vst.msk [vmem:[%s278 + $0x48] sm:$0xf] %vm1067, %v1008
        %1087 = vst.msk [vmem:[%s278 + $0x4c] sm:$0xf] %vm1067, %v1010
        %1088 = vst.msk [vmem:[%s278 + $0x50] sm:$0xf] %vm1067, %v1012
        %1089 = vst.msk [vmem:[%s278 + $0x54] sm:$0xf] %vm1067, %v1014
        %1090 = vst.msk [vmem:[%s278 + $0x58] sm:$0xf] %vm1067, %v1016
        %1091 = vst.msk [vmem:[%s278 + $0x5c] sm:$0xf] %vm1067, %v1018
        %1092 = vst.msk [vmem:[%s278 + $0x60] sm:$0xf] %vm1067, %v1020
        %1093 = vst.msk [vmem:[%s278 + $0x64] sm:$0xf] %vm1067, %v1022
        %1094 = vst.msk [vmem:[%s278 + $0x68] sm:$0xf] %vm1067, %v1024
        %1095 = vst.msk [vmem:[%s278 + $0x6c] sm:$0xf] %vm1067, %v1026
        %1096 = vst.msk [vmem:[%s278 + $0x70] sm:$0xf] %vm1067, %v1028
        %1097 = vst.msk [vmem:[%s278 + $0x74] sm:$0xf] %vm1067, %v1030
        %1098 = vst.msk [vmem:[%s278 + $0x78] sm:$0xf] %vm1067, %v1032
        %1099 = vst.msk [vmem:[%s278 + $0x7c] sm:$0xf] %vm1067, %v1034
        %vm1100 = vcmask 1044032
        %1101 = vst.msk [vmem:[%s278] sm:$0xf] %vm1100, 0
        %1102 = vst.msk [vmem:[%s278 + $0x4] sm:$0xf] %vm1100, 0
        %1103 = vst.msk [vmem:[%s278 + $0x8] sm:$0xf] %vm1100, 0
        %1104 = vst.msk [vmem:[%s278 + $0xc] sm:$0xf] %vm1100, 0
        %1105 = vst.msk [vmem:[%s278 + $0x10] sm:$0xf] %vm1100, 0
        %1106 = vst.msk [vmem:[%s278 + $0x14] sm:$0xf] %vm1100, 0
        %1107 = vst.msk [vmem:[%s278 + $0x18] sm:$0xf] %vm1100, 0
        %1108 = vst.msk [vmem:[%s278 + $0x1c] sm:$0xf] %vm1100, 0
        %1109 = vst.msk [vmem:[%s278 + $0x20] sm:$0xf] %vm1100, 0
        %1110 = vst.msk [vmem:[%s278 + $0x24] sm:$0xf] %vm1100, 0
        %1111 = vst.msk [vmem:[%s278 + $0x28] sm:$0xf] %vm1100, 0
        %1112 = vst.msk [vmem:[%s278 + $0x2c] sm:$0xf] %vm1100, 0
        %1113 = vst.msk [vmem:[%s278 + $0x30] sm:$0xf] %vm1100, 0
        %1114 = vst.msk [vmem:[%s278 + $0x34] sm:$0xf] %vm1100, 0
        %1115 = vst.msk [vmem:[%s278 + $0x38] sm:$0xf] %vm1100, 0
        %1116 = vst.msk [vmem:[%s278 + $0x3c] sm:$0xf] %vm1100, 0
        %1117 = vst.msk [vmem:[%s278 + $0x40] sm:$0xf] %vm1100, 0
        %1118 = vst.msk [vmem:[%s278 + $0x44] sm:$0xf] %vm1100, 0
        %1119 = vst.msk [vmem:[%s278 + $0x48] sm:$0xf] %vm1100, 0
        %1120 = vst.msk [vmem:[%s278 + $0x4c] sm:$0xf] %vm1100, 0
        %1121 = vst.msk [vmem:[%s278 + $0x50] sm:$0xf] %vm1100, 0
        %1122 = vst.msk [vmem:[%s278 + $0x54] sm:$0xf] %vm1100, 0
        %1123 = vst.msk [vmem:[%s278 + $0x58] sm:$0xf] %vm1100, 0
        %1124 = vst.msk [vmem:[%s278 + $0x5c] sm:$0xf] %vm1100, 0
        %1125 = vst.msk [vmem:[%s278 + $0x60] sm:$0xf] %vm1100, 0
        %1126 = vst.msk [vmem:[%s278 + $0x64] sm:$0xf] %vm1100, 0
        %1127 = vst.msk [vmem:[%s278 + $0x68] sm:$0xf] %vm1100, 0
        %1128 = vst.msk [vmem:[%s278 + $0x6c] sm:$0xf] %vm1100, 0
        %1129 = vst.msk [vmem:[%s278 + $0x70] sm:$0xf] %vm1100, 0
        %1130 = vst.msk [vmem:[%s278 + $0x74] sm:$0xf] %vm1100, 0
        %1131 = vst.msk [vmem:[%s278 + $0x78] sm:$0xf] %vm1100, 0
        %1132 = vst.msk [vmem:[%s278 + $0x7c] sm:$0xf] %vm1100, 0
        %s1133 = sand.u32 %s161, 1
        %s1134 = scalar_lea.sflag [#allocation4], %s1133
        %s1135 = sand.u32 %s161, 1
        %s1136 = smul.addr %s1135, 128
        %s1137 = scalar_lea.vmem [#allocation7], %s1136
        // Predicated region
        $region53: #{tpu_custom_call.1} parent=43 // pred_check
          %p1138 = pneg %p171
        $region54: #{tpu_custom_call.1} parent=43 // pred_check_branch
          %1140 = sbr.rel (%p1138) target = $region56
        $region55: #{tpu_custom_call.1} parent=43 // pred_region
          %1142 = vsyncadd %s1134, 0
          %s1143 = smul.addr %s22, 32
          %s1144 = smul.addr %s1143, 4
          %s1145 = scalar_lea.hbm %s6, %s1144
          %s1146 = sshll.u32 %s1137, 4
          %s1147 = int_to_ptr.vmem [resolvable:$true] %s1146
          %s1148 = sshll.u32 %s1145, 4
          %s1149 = int_to_ptr.hbm [resolvable:$true] %s1148
          %1154 = dma.vmem_to_hbm [thread:$0]  %s1147, 2048, %s1149, %s1134, 64, 64, 4
        $region56: #{tpu_custom_call.1} parent=43 // pred_fallthru
          _
      $region44: #{tpu_custom_call.1} parent=5 // pred_fallthru
        _
      %p1155 = scmp.le.s32.totalorder 2, %s17
      // Predicated region
      $region57: #{tpu_custom_call.1} parent=5 // pred_check
        %p1156 = pneg %p1155
      $region58: #{tpu_custom_call.1} parent=5 // pred_check_branch
        %1158 = sbr.rel (%p1156) target = $region60
      $region59: #{tpu_custom_call.1} parent=5 // pred_region
        %s1159 = ssub.s32 %s17, 2
        // Predicated region
        $region61: #{tpu_custom_call.1} parent=59 // pred_check
          %p1160 = pneg %p177
        $region62: #{tpu_custom_call.1} parent=59 // pred_check_branch
          %1162 = sbr.rel (%p1160) target = $region64
        $region63: #{tpu_custom_call.1} parent=59 // pred_region
          %s1163 = sand.u32 %s162, 1
          %s1164 = scalar_lea.sflag [#allocation4], %s1163
          %s1165 = sand.u32 %s162, 1
          %s1166 = smul.addr %s1165, 128
          %s1167 = scalar_lea.vmem [#allocation7], %s1166
          %1169 = dma.done %s1164, 2048
        $region64: #{tpu_custom_call.1} parent=59 // pred_fallthru
          _
      $region60: #{tpu_custom_call.1} parent=5 // pred_fallthru
        _
    $region6: #{tpu_custom_call.1} parent=1 // loop_footer
      %s21 = sadd.s32 1, %s17
    $region7: #{tpu_custom_call.1} parent=1 // loop_footer_branch
      %16 = sbr.rel target = $region3
    $region8: #{tpu_custom_call.1} parent=1 // loop_exit
      _
    %1170 = vsyncpa [#allocation3], 1
    %s1171 = scalar_lea.sflag [#allocation3], 1
    %1172 = vsyncpa %s1171, 1
    %1173 = vsyncpa [#allocation6], 1
    %1174 = vsyncpa [#allocation4], 1
    %s1175 = scalar_lea.sflag [#allocation4], 1
    %1176 = vsyncpa %s1175, 1

</llo_original>
